<compile_context>
chip_gen: v5e
topology: v5e:2x2
jax: 0.10.0
libtpu: 0.0.40
codegen_flags: <defaults>
</compile_context>

<pallas_src>
import functools

import jax
import jax.numpy as jnp
from jax import lax
from jax.experimental import pallas as pl
from jax.experimental.pallas import tpu as pltpu

LANES = 128
SUBLANES = 8
SMOOTH = 1e-5
WEIGHT_CE = 0.8
MAX_TILE_BYTES = 4 << 20   # per input, per pipeline buffer
MAX_TILE_ROWS = 16384      # hard cap on rows regardless of dtype
NCORES = 2                 # split the reduction across 2 TCs on v7x; harmless on v5e/v6e


def _round_up(x, m):
    return ((x + m - 1) // m) * m


def _cdiv(a, b):
    return -(-a // b)


def _accum_tile(p_ref, t_ref, acc_ref, *, tile_rows, row0, rows_valid, masked):
    """Accumulate [sum(p*t), sum(p), sum(t), sum(t*logp+(1-t)*log1mp)] over one tile.

    Processes the tile as (8,128) sub-slabs inside a fori_loop with four f32
    vreg accumulators so no tile-sized temporaries hit VMEM.
    """
    n_sub = tile_rows // SUBLANES

    def body(j, carry):
        inter_a, p_a, t_a, bce_a = carry
        r = pl.multiple_of(j * SUBLANES, SUBLANES)
        p = p_ref[pl.ds(r, SUBLANES), :].astype(jnp.float32)
        t = t_ref[pl.ds(r, SUBLANES), :].astype(jnp.float32)
        if masked:
            # Row-granularity tail mask (garbage rows beyond the real slab).
            sub = lax.broadcasted_iota(jnp.int32, (SUBLANES, LANES), 0)
            valid = (row0 + r + sub) < rows_valid
            p = jnp.where(valid, p, 0.0)
            t = jnp.where(valid, t, 0.0)
        # PyTorch nn.BCELoss clamps the log terms at -100, keeping p==0/p==1
        # finite; masked/padded elements (p=t=0) then contribute exactly 0.
        log_p = jnp.maximum(jnp.log(p), -100.0)
        log_1mp = jnp.maximum(jnp.log(1.0 - p), -100.0)
        bce = t * (log_p - log_1mp) + log_1mp   # = -(per-element BCE); negated in epilogue
        return (inter_a + p * t, p_a + p, t_a + t, bce_a + bce)

    zero = jnp.zeros((SUBLANES, LANES), jnp.float32)
    inter_a, p_a, t_a, bce_a = lax.fori_loop(
        0, n_sub, body, (zero, zero, zero, zero), unroll=min(8, n_sub))

    acc_ref[0, 0, :, :] += inter_a
    acc_ref[0, 1, :, :] += p_a
    acc_ref[0, 2, :, :] += t_a
    acc_ref[0, 3, :, :] += bce_a


def _dice_bce_kernel(p_ref, t_ref, acc_ref, *, tile_rows, steps_per_core, rows_valid):
    """p_ref/t_ref: (tile_rows, 128) tiles. acc_ref: (1,4,8,128) resident block."""
    c = pl.program_id(0)
    i = pl.program_id(1)

    @pl.when(i == 0)
    def _():
        acc_ref[...] = jnp.zeros_like(acc_ref)

    block = c * steps_per_core + i          # un-clamped global block index
    row0 = block * tile_rows
    full = row0 + tile_rows <= rows_valid   # every row in-bounds -> fast path

    @pl.when(full)
    def _():
        _accum_tile(p_ref, t_ref, acc_ref, tile_rows=tile_rows, row0=row0,
                    rows_valid=rows_valid, masked=False)

    @pl.when(jnp.logical_not(full))
    def _():
        _accum_tile(p_ref, t_ref, acc_ref, tile_rows=tile_rows, row0=row0,
                    rows_valid=rows_valid, masked=True)


def dice_bce_loss(net_output, target):
    """Pallas TPU implementation of DiceBCELoss(weight_ce=0.8).forward."""
    assert net_output.shape == target.shape
    total_n = int(net_output.size)
    assert total_n > 0

    flat_p = jnp.reshape(net_output, (-1,))
    flat_t = jnp.reshape(target, (-1,))

    # Pad only when total_n is not already a multiple of 8*128 (keeps every
    # block sublane-aligned).  The common aligned case pays nothing; the
    # misaligned case pays one copy with < 1024 extra elements (zeros, which
    # contribute 0 to all four partial sums).
    chunk = SUBLANES * LANES
    rem = total_n % chunk
    if rem:
        flat_p = jnp.pad(flat_p, (0, chunk - rem))
        flat_t = jnp.pad(flat_t, (0, chunk - rem))
    rows = _round_up(total_n, chunk) // LANES   # real rows of the slab (mult of 8)

    p2d = flat_p.reshape(rows, LANES)
    t2d = flat_t.reshape(rows, LANES)

    itemsize = p2d.dtype.itemsize
    rows_by_bytes = max(SUBLANES,
                        (MAX_TILE_BYTES // (LANES * itemsize)) // SUBLANES * SUBLANES)
    tile_rows = min(MAX_TILE_ROWS, rows_by_bytes,
                    _round_up(_cdiv(rows, NCORES), SUBLANES))
    num_blocks = _cdiv(rows, tile_rows)
    steps_per_core = _cdiv(num_blocks, NCORES)

    # Explicit scoped-VMEM budget: 2 inputs x 2 pipeline buffers + headroom.
    # Raises v5e's 16 MiB default; stays well under every generation's physical VMEM.
    tile_bytes = tile_rows * LANES * itemsize
    vmem_limit = int(2 * 2 * tile_bytes + (16 << 20))

    in_bytes = p2d.size * itemsize + t2d.size * t2d.dtype.itemsize
    out_bytes = NCORES * 4 * SUBLANES * LANES * 4
    cost = pl.CostEstimate(flops=12 * total_n, transcendentals=2 * total_n,
                           bytes_accessed=in_bytes + out_bytes)

    def in_map(c, i):
        # Clamp so an over-covering grid step never issues an OOB DMA; the
        # kernel masks such steps to zero contribution anyway.
        return (jnp.minimum(c * steps_per_core + i, num_blocks - 1), 0)

    kernel = functools.partial(_dice_bce_kernel, tile_rows=tile_rows,
                               steps_per_core=steps_per_core, rows_valid=rows)

    partials = pl.pallas_call(
        kernel,
        out_shape=jax.ShapeDtypeStruct((NCORES, 4, SUBLANES, LANES), jnp.float32),
        grid=(NCORES, steps_per_core),
        in_specs=[
            pl.BlockSpec((tile_rows, LANES), in_map),
            pl.BlockSpec((tile_rows, LANES), in_map),
        ],
        out_specs=pl.BlockSpec((1, 4, SUBLANES, LANES),
                               lambda c, i: (c, 0, 0, 0)),
        compiler_params=pltpu.CompilerParams(
            dimension_semantics=("parallel", "arbitrary"),
            vmem_limit_bytes=vmem_limit),
        cost_estimate=cost,
    )(p2d, t2d)

    # Tiny epilogue in plain JAX: combine the per-core, vreg-shaped partials
    # (8 KiB total) into the final scalar.
    sums = jnp.sum(partials, axis=(0, 2, 3))  # [inter, sum_p, sum_t, pos_bce_sum]
    inter, sum_p, sum_t, bce_pos = sums[0], sums[1], sums[2], sums[3]
    score = (2.0 * inter + SMOOTH) / (sum_p + sum_t + SMOOTH)
    dc_loss = 1.0 - score
    ce_loss = -bce_pos / float(total_n)       # negation + mean folded here
    return WEIGHT_CE * ce_loss + (1.0 - WEIGHT_CE) * dc_loss


def dice_bce_loss_ref(net_output, target):
    p = jnp.reshape(net_output, (-1,)).astype(jnp.float32)
    t = jnp.reshape(target, (-1,)).astype(jnp.float32)
    inter = jnp.sum(p * t)
    score = (2.0 * inter + SMOOTH) / (jnp.sum(p) + jnp.sum(t) + SMOOTH)
    dc = 1.0 - score
    log_p = jnp.maximum(jnp.log(p), -100.0)
    log_1mp = jnp.maximum(jnp.log(1.0 - p), -100.0)
    ce = jnp.mean(-(t * log_p + (1.0 - t) * log_1mp))
    return WEIGHT_CE * ce + (1.0 - WEIGHT_CE) * dc


if __name__ == "__main__":
    key = jax.random.PRNGKey(0)
    k1, k2 = jax.random.split(key)
    B, C, H, W = 2, 4, 16, 16  # NCHW, like the PyTorch module's inputs
    logits = jax.random.normal(k1, (B, C, H, W), dtype=jnp.float32)
    net_output = jax.nn.sigmoid(logits)  # probabilities in (0,1), as BCELoss expects
    target = jax.random.bernoulli(k2, 0.5, (B, C, H, W)).astype(jnp.float32)

    loss = jax.block_until_ready(jax.jit(dice_bce_loss)(net_output, target))
    ref = jax.block_until_ready(dice_bce_loss_ref(net_output, target))
    assert jnp.allclose(loss, ref, rtol=1e-5, atol=1e-6), (loss, ref)
    print("KERNEL_OK")
</pallas_src>

<mosaic_0001>
module attributes {stable_mosaic.version = 11 : i64} {
  func.func @_dice_bce_kernel(%arg0: i32, %arg1: i32, %arg2: memref<8x128xf32, #tpu.memory_space<vmem>>, %arg3: memref<8x128xf32, #tpu.memory_space<vmem>>, %arg4: memref<1x4x8x128xf32, #tpu.memory_space<vmem>>) attributes {dimension_semantics = [#tpu.dimension_semantics<parallel>, #tpu.dimension_semantics<arbitrary>], iteration_bounds = array<i64: 2, 1>, scalar_prefetch = 0 : i64, scratch_operands = 0 : i64, tpu.core_type = #tpu.core_type<tc>, window_params = [{transform_indices = @transform_0, window_bounds = array<i64: 8, 128>}, {transform_indices = @transform_1, window_bounds = array<i64: 8, 128>}, {transform_indices = @transform_2, window_bounds = array<i64: 1, 4, 8, 128>}]} {
    %c0_i32 = arith.constant 0 : i32
    %0 = arith.cmpi eq, %arg1, %c0_i32 : i32
    %1 = arith.extui %0 : i1 to i32
    %c0_i32_0 = arith.constant 0 : i32
    %2 = arith.cmpi ne, %1, %c0_i32_0 : i32
    scf.if %2 {
      %cst = arith.constant 0.000000e+00 : f32
      %13 = vector.broadcast %cst : f32 to vector<1x4x8x128xf32>
      %c0 = arith.constant 0 : index
      %c0_4 = arith.constant 0 : index
      %c0_5 = arith.constant 0 : index
      %c0_6 = arith.constant 0 : index
      %14 = vector.load %arg4[%c0, %c0_4, %c0_5, %c0_6] : memref<1x4x8x128xf32, #tpu.memory_space<vmem>>, vector<1x4x8x128xf32>
      tpu.vector_store %arg4[%c0, %c0_4, %c0_5, %c0_6], %13 {strides = array<i32>} : memref<1x4x8x128xf32, #tpu.memory_space<vmem>>, vector<1x4x8x128xf32>,
    } else {
    }
    %c1_i32 = arith.constant 1 : i32
    %3 = arith.muli %arg0, %c1_i32 : i32
    %4 = arith.addi %3, %arg1 : i32
    %c8_i32 = arith.constant 8 : i32
    %5 = arith.muli %4, %c8_i32 : i32
    %c8_i32_1 = arith.constant 8 : i32
    %6 = arith.addi %5, %c8_i32_1 : i32
    %c16_i32 = arith.constant 16 : i32
    %7 = arith.cmpi sle, %6, %c16_i32 : i32
    %8 = arith.extui %7 : i1 to i32
    %c0_i32_2 = arith.constant 0 : i32
    %9 = arith.cmpi ne, %8, %c0_i32_2 : i32
    scf.if %9 {
      %cst = arith.constant 0.000000e+00 : f32
      %13 = vector.broadcast %cst : f32 to vector<8x128xf32>
      %c0_i32_4 = arith.constant 0 : i32
      %c8_i32_5 = arith.constant 8 : i32
      %14 = arith.muli %c0_i32_4, %c8_i32_5 : i32
      %15 = tpu.assume_multiple %14, 8 : i32
      %16 = arith.index_cast %15 : i32 to index
      %c0 = arith.constant 0 : index
      %17 = vector.load %arg2[%16, %c0] : memref<8x128xf32, #tpu.memory_space<vmem>>, vector<8x128xf32>
      %18 = arith.index_cast %15 : i32 to index
      %c0_6 = arith.constant 0 : index
      %19 = vector.load %arg3[%18, %c0_6] : memref<8x128xf32, #tpu.memory_space<vmem>>, vector<8x128xf32>
      %20 = math.log %17 : vector<8x128xf32>
      %cst_7 = arith.constant -1.000000e+02 : f32
      %21 = vector.broadcast %cst_7 : f32 to vector<8x128xf32>
      %22 = arith.maximumf %20, %21 : vector<8x128xf32>
      %cst_8 = arith.constant 1.000000e+00 : f32
      %23 = vector.broadcast %cst_8 : f32 to vector<8x128xf32>
      %24 = arith.subf %23, %17 : vector<8x128xf32>
      %25 = math.log %24 : vector<8x128xf32>
      %cst_9 = arith.constant -1.000000e+02 : f32
      %26 = vector.broadcast %cst_9 : f32 to vector<8x128xf32>
      %27 = arith.maximumf %25, %26 : vector<8x128xf32>
      %28 = arith.subf %22, %27 : vector<8x128xf32>
      %29 = arith.mulf %19, %28 : vector<8x128xf32>
      %30 = arith.addf %29, %27 : vector<8x128xf32>
      %31 = arith.mulf %17, %19 : vector<8x128xf32>
      %32 = arith.addf %13, %31 : vector<8x128xf32>
      %33 = arith.addf %13, %17 : vector<8x128xf32>
      %34 = arith.addf %13, %19 : vector<8x128xf32>
      %35 = arith.addf %13, %30 : vector<8x128xf32>
      %c1_i32_10 = arith.constant 1 : i32
      %c0_11 = arith.constant 0 : index
      %c0_12 = arith.constant 0 : index
      %c0_13 = arith.constant 0 : index
      %c0_14 = arith.constant 0 : index
      %36 = vector.load %arg4[%c0_11, %c0_12, %c0_13, %c0_14] : memref<1x4x8x128xf32, #tpu.memory_space<vmem>>, vector<1x1x8x128xf32>
      %37 = vector.shape_cast %36 : vector<1x1x8x128xf32> to vector<8x128xf32>
      %38 = arith.addf %37, %32 : vector<8x128xf32>
      %c0_15 = arith.constant 0 : index
      %c0_16 = arith.constant 0 : index
      %c0_17 = arith.constant 0 : index
      %c0_18 = arith.constant 0 : index
      %39 = vector.load %arg4[%c0_15, %c0_16, %c0_17, %c0_18] : memref<1x4x8x128xf32, #tpu.memory_space<vmem>>, vector<1x1x8x128xf32>
      %40 = vector.shape_cast %39 : vector<1x1x8x128xf32> to vector<8x128xf32>
      %41 = vector.shape_cast %38 : vector<8x128xf32> to vector<1x1x8x128xf32>
      tpu.vector_store %arg4[%c0_15, %c0_16, %c0_17, %c0_18], %41 {strides = array<i32>} : memref<1x4x8x128xf32, #tpu.memory_space<vmem>>, vector<1x1x8x128xf32>,
      %c0_19 = arith.constant 0 : index
      %c1 = arith.constant 1 : index
      %c0_20 = arith.constant 0 : index
      %c0_21 = arith.constant 0 : index
      %42 = vector.load %arg4[%c0_19, %c1, %c0_20, %c0_21] : memref<1x4x8x128xf32, #tpu.memory_space<vmem>>, vector<1x1x8x128xf32>
      %43 = vector.shape_cast %42 : vector<1x1x8x128xf32> to vector<8x128xf32>
      %44 = arith.addf %43, %33 : vector<8x128xf32>
      %c0_22 = arith.constant 0 : index
      %c1_23 = arith.constant 1 : index
      %c0_24 = arith.constant 0 : index
      %c0_25 = arith.constant 0 : index
      %45 = vector.load %arg4[%c0_22, %c1_23, %c0_24, %c0_25] : memref<1x4x8x128xf32, #tpu.memory_space<vmem>>, vector<1x1x8x128xf32>
      %46 = vector.shape_cast %45 : vector<1x1x8x128xf32> to vector<8x128xf32>
      %47 = vector.shape_cast %44 : vector<8x128xf32> to vector<1x1x8x128xf32>
      tpu.vector_store %arg4[%c0_22, %c1_23, %c0_24, %c0_25], %47 {strides = array<i32>} : memref<1x4x8x128xf32, #tpu.memory_space<vmem>>, vector<1x1x8x128xf32>,
      %c0_26 = arith.constant 0 : index
      %c2 = arith.constant 2 : index
      %c0_27 = arith.constant 0 : index
      %c0_28 = arith.constant 0 : index
      %48 = vector.load %arg4[%c0_26, %c2, %c0_27, %c0_28] : memref<1x4x8x128xf32, #tpu.memory_space<vmem>>, vector<1x1x8x128xf32>
      %49 = vector.shape_cast %48 : vector<1x1x8x128xf32> to vector<8x128xf32>
      %50 = arith.addf %49, %34 : vector<8x128xf32>
      %c0_29 = arith.constant 0 : index
      %c2_30 = arith.constant 2 : index
      %c0_31 = arith.constant 0 : index
      %c0_32 = arith.constant 0 : index
      %51 = vector.load %arg4[%c0_29, %c2_30, %c0_31, %c0_32] : memref<1x4x8x128xf32, #tpu.memory_space<vmem>>, vector<1x1x8x128xf32>
      %52 = vector.shape_cast %51 : vector<1x1x8x128xf32> to vector<8x128xf32>
      %53 = vector.shape_cast %50 : vector<8x128xf32> to vector<1x1x8x128xf32>
      tpu.vector_store %arg4[%c0_29, %c2_30, %c0_31, %c0_32], %53 {strides = array<i32>} : memref<1x4x8x128xf32, #tpu.memory_space<vmem>>, vector<1x1x8x128xf32>,
      %c0_33 = arith.constant 0 : index
      %c3 = arith.constant 3 : index
      %c0_34 = arith.constant 0 : index
      %c0_35 = arith.constant 0 : index
      %54 = vector.load %arg4[%c0_33, %c3, %c0_34, %c0_35] : memref<1x4x8x128xf32, #tpu.memory_space<vmem>>, vector<1x1x8x128xf32>
      %55 = vector.shape_cast %54 : vector<1x1x8x128xf32> to vector<8x128xf32>
      %56 = arith.addf %55, %35 : vector<8x128xf32>
      %c0_36 = arith.constant 0 : index
      %c3_37 = arith.constant 3 : index
      %c0_38 = arith.constant 0 : index
      %c0_39 = arith.constant 0 : index
      %57 = vector.load %arg4[%c0_36, %c3_37, %c0_38, %c0_39] : memref<1x4x8x128xf32, #tpu.memory_space<vmem>>, vector<1x1x8x128xf32>
      %58 = vector.shape_cast %57 : vector<1x1x8x128xf32> to vector<8x128xf32>
      %59 = vector.shape_cast %56 : vector<8x128xf32> to vector<1x1x8x128xf32>
      tpu.vector_store %arg4[%c0_36, %c3_37, %c0_38, %c0_39], %59 {strides = array<i32>} : memref<1x4x8x128xf32, #tpu.memory_space<vmem>>, vector<1x1x8x128xf32>,
    } else {
    }
    %true = arith.constant true
    %10 = arith.xori %7, %true : i1
    %11 = arith.extui %10 : i1 to i32
    %c0_i32_3 = arith.constant 0 : i32
    %12 = arith.cmpi ne, %11, %c0_i32_3 : i32
    scf.if %12 {
      %cst = arith.constant 0.000000e+00 : f32
      %13 = vector.broadcast %cst : f32 to vector<8x128xf32>
      %c0_i32_4 = arith.constant 0 : i32
      %c8_i32_5 = arith.constant 8 : i32
      %14 = arith.muli %c0_i32_4, %c8_i32_5 : i32
      %15 = tpu.assume_multiple %14, 8 : i32
      %16 = arith.index_cast %15 : i32 to index
      %c0 = arith.constant 0 : index
      %17 = vector.load %arg2[%16, %c0] : memref<8x128xf32, #tpu.memory_space<vmem>>, vector<8x128xf32>
      %18 = arith.index_cast %15 : i32 to index
      %c0_6 = arith.constant 0 : index
      %19 = vector.load %arg3[%18, %c0_6] : memref<8x128xf32, #tpu.memory_space<vmem>>, vector<8x128xf32>
      %20 = tpu.iota {dimensions = array<i32: 0>} : vector<8x128xi32>
      %21 = arith.addi %5, %15 : i32
      %22 = vector.broadcast %21 : i32 to vector<8x128xi32>
      %23 = arith.addi %22, %20 : vector<8x128xi32>
      %c16_i32_7 = arith.constant 16 : i32
      %24 = vector.broadcast %c16_i32_7 : i32 to vector<8x128xi32>
      %25 = arith.cmpi slt, %23, %24 : vector<8x128xi32>
      %cst_8 = arith.constant 0.000000e+00 : f32
      %26 = vector.broadcast %cst_8 : f32 to vector<8x128xf32>
      %27 = arith.select %25, %17, %26 : vector<8x128xi1>, vector<8x128xf32>
      %cst_9 = arith.constant 0.000000e+00 : f32
      %28 = vector.broadcast %cst_9 : f32 to vector<8x128xf32>
      %29 = arith.select %25, %19, %28 : vector<8x128xi1>, vector<8x128xf32>
      %30 = math.log %27 : vector<8x128xf32>
      %cst_10 = arith.constant -1.000000e+02 : f32
      %31 = vector.broadcast %cst_10 : f32 to vector<8x128xf32>
      %32 = arith.maximumf %30, %31 : vector<8x128xf32>
      %cst_11 = arith.constant 1.000000e+00 : f32
      %33 = vector.broadcast %cst_11 : f32 to vector<8x128xf32>
      %34 = arith.subf %33, %27 : vector<8x128xf32>
      %35 = math.log %34 : vector<8x128xf32>
      %cst_12 = arith.constant -1.000000e+02 : f32
      %36 = vector.broadcast %cst_12 : f32 to vector<8x128xf32>
      %37 = arith.maximumf %35, %36 : vector<8x128xf32>
      %38 = arith.subf %32, %37 : vector<8x128xf32>
      %39 = arith.mulf %29, %38 : vector<8x128xf32>
      %40 = arith.addf %39, %37 : vector<8x128xf32>
      %41 = arith.mulf %27, %29 : vector<8x128xf32>
      %42 = arith.addf %13, %41 : vector<8x128xf32>
      %43 = arith.addf %13, %27 : vector<8x128xf32>
      %44 = arith.addf %13, %29 : vector<8x128xf32>
      %45 = arith.addf %13, %40 : vector<8x128xf32>
      %c1_i32_13 = arith.constant 1 : i32
      %c0_14 = arith.constant 0 : index
      %c0_15 = arith.constant 0 : index
      %c0_16 = arith.constant 0 : index
      %c0_17 = arith.constant 0 : index
      %46 = vector.load %arg4[%c0_14, %c0_15, %c0_16, %c0_17] : memref<1x4x8x128xf32, #tpu.memory_space<vmem>>, vector<1x1x8x128xf32>
      %47 = vector.shape_cast %46 : vector<1x1x8x128xf32> to vector<8x128xf32>
      %48 = arith.addf %47, %42 : vector<8x128xf32>
      %c0_18 = arith.constant 0 : index
      %c0_19 = arith.constant 0 : index
      %c0_20 = arith.constant 0 : index
      %c0_21 = arith.constant 0 : index
      %49 = vector.load %arg4[%c0_18, %c0_19, %c0_20, %c0_21] : memref<1x4x8x128xf32, #tpu.memory_space<vmem>>, vector<1x1x8x128xf32>
      %50 = vector.shape_cast %49 : vector<1x1x8x128xf32> to vector<8x128xf32>
      %51 = vector.shape_cast %48 : vector<8x128xf32> to vector<1x1x8x128xf32>
      tpu.vector_store %arg4[%c0_18, %c0_19, %c0_20, %c0_21], %51 {strides = array<i32>} : memref<1x4x8x128xf32, #tpu.memory_space<vmem>>, vector<1x1x8x128xf32>,
      %c0_22 = arith.constant 0 : index
      %c1 = arith.constant 1 : index
      %c0_23 = arith.constant 0 : index
      %c0_24 = arith.constant 0 : index
      %52 = vector.load %arg4[%c0_22, %c1, %c0_23, %c0_24] : memref<1x4x8x128xf32, #tpu.memory_space<vmem>>, vector<1x1x8x128xf32>
      %53 = vector.shape_cast %52 : vector<1x1x8x128xf32> to vector<8x128xf32>
      %54 = arith.addf %53, %43 : vector<8x128xf32>
      %c0_25 = arith.constant 0 : index
      %c1_26 = arith.constant 1 : index
      %c0_27 = arith.constant 0 : index
      %c0_28 = arith.constant 0 : index
      %55 = vector.load %arg4[%c0_25, %c1_26, %c0_27, %c0_28] : memref<1x4x8x128xf32, #tpu.memory_space<vmem>>, vector<1x1x8x128xf32>
      %56 = vector.shape_cast %55 : vector<1x1x8x128xf32> to vector<8x128xf32>
      %57 = vector.shape_cast %54 : vector<8x128xf32> to vector<1x1x8x128xf32>
      tpu.vector_store %arg4[%c0_25, %c1_26, %c0_27, %c0_28], %57 {strides = array<i32>} : memref<1x4x8x128xf32, #tpu.memory_space<vmem>>, vector<1x1x8x128xf32>,
      %c0_29 = arith.constant 0 : index
      %c2 = arith.constant 2 : index
      %c0_30 = arith.constant 0 : index
      %c0_31 = arith.constant 0 : index
      %58 = vector.load %arg4[%c0_29, %c2, %c0_30, %c0_31] : memref<1x4x8x128xf32, #tpu.memory_space<vmem>>, vector<1x1x8x128xf32>
      %59 = vector.shape_cast %58 : vector<1x1x8x128xf32> to vector<8x128xf32>
      %60 = arith.addf %59, %44 : vector<8x128xf32>
      %c0_32 = arith.constant 0 : index
      %c2_33 = arith.constant 2 : index
      %c0_34 = arith.constant 0 : index
      %c0_35 = arith.constant 0 : index
      %61 = vector.load %arg4[%c0_32, %c2_33, %c0_34, %c0_35] : memref<1x4x8x128xf32, #tpu.memory_space<vmem>>, vector<1x1x8x128xf32>
      %62 = vector.shape_cast %61 : vector<1x1x8x128xf32> to vector<8x128xf32>
      %63 = vector.shape_cast %60 : vector<8x128xf32> to vector<1x1x8x128xf32>
      tpu.vector_store %arg4[%c0_32, %c2_33, %c0_34, %c0_35], %63 {strides = array<i32>} : memref<1x4x8x128xf32, #tpu.memory_space<vmem>>, vector<1x1x8x128xf32>,
      %c0_36 = arith.constant 0 : index
      %c3 = arith.constant 3 : index
      %c0_37 = arith.constant 0 : index
      %c0_38 = arith.constant 0 : index
      %64 = vector.load %arg4[%c0_36, %c3, %c0_37, %c0_38] : memref<1x4x8x128xf32, #tpu.memory_space<vmem>>, vector<1x1x8x128xf32>
      %65 = vector.shape_cast %64 : vector<1x1x8x128xf32> to vector<8x128xf32>
      %66 = arith.addf %65, %45 : vector<8x128xf32>
      %c0_39 = arith.constant 0 : index
      %c3_40 = arith.constant 3 : index
      %c0_41 = arith.constant 0 : index
      %c0_42 = arith.constant 0 : index
      %67 = vector.load %arg4[%c0_39, %c3_40, %c0_41, %c0_42] : memref<1x4x8x128xf32, #tpu.memory_space<vmem>>, vector<1x1x8x128xf32>
      %68 = vector.shape_cast %67 : vector<1x1x8x128xf32> to vector<8x128xf32>
      %69 = vector.shape_cast %66 : vector<8x128xf32> to vector<1x1x8x128xf32>
      tpu.vector_store %arg4[%c0_39, %c3_40, %c0_41, %c0_42], %69 {strides = array<i32>} : memref<1x4x8x128xf32, #tpu.memory_space<vmem>>, vector<1x1x8x128xf32>,
    } else {
    }
    return
  }
  func.func @transform_0(%arg0: i32, %arg1: i32) -> (i32, i32) {
    %c1_i32 = arith.constant 1 : i32
    %0 = arith.muli %arg0, %c1_i32 : i32
    %1 = arith.addi %0, %arg1 : i32
    %c1_i32_0 = arith.constant 1 : i32
    %2 = arith.minsi %1, %c1_i32_0 : i32
    %c0_i32 = arith.constant 0 : i32
    %c0_i32_1 = arith.constant 0 : i32
    return %2, %c0_i32 : i32, i32
  }
  func.func @transform_1(%arg0: i32, %arg1: i32) -> (i32, i32) {
    %c1_i32 = arith.constant 1 : i32
    %0 = arith.muli %arg0, %c1_i32 : i32
    %1 = arith.addi %0, %arg1 : i32
    %c1_i32_0 = arith.constant 1 : i32
    %2 = arith.minsi %1, %c1_i32_0 : i32
    %c0_i32 = arith.constant 0 : i32
    %c0_i32_1 = arith.constant 0 : i32
    return %2, %c0_i32 : i32, i32
  }
  func.func @transform_2(%arg0: i32, %arg1: i32) -> (i32, i32, i32, i32) {
    %c0_i32 = arith.constant 0 : i32
    %c0_i32_0 = arith.constant 0 : i32
    %c0_i32_1 = arith.constant 0 : i32
    %c0_i32_2 = arith.constant 0 : i32
    return %arg0, %c0_i32, %c0_i32_0, %c0_i32_1 : i32, i32, i32, i32
  }
}

</mosaic_0001>

<llo_original>
// kernel: dice_bce_loss.1
$region0: #{dice_bce_loss.1}
  #allocation0 [shape = 'u32[]', space=smem, size = 0x4, offset = 0x4, fixed_abs, tag = 'smem constant byte address 0x4 - core index']
  #allocation1 [shape = 'u32[72,128]{1,0:T(1,128)}', space=vmem, size = 0x9000, scoped, tag = 'internal scratch']
  %s0 = inlined_call_operand.vmem [shape: f32[16,128], index: 0, kind: input, shape index: {}]
  %s1 = inlined_call_operand.vmem [shape: f32[16,128], index: 1, kind: input, shape index: {}]
  %s2 = inlined_call_operand.vmem [shape: f32[2,4,8,128], index: 2, kind: output, shape index: {}]
  %s3 = sld [smem:[#allocation0]]
  $region53: #{dice_bce_loss.1} parent=0
    _
  %s5 = ssub.s32 1, %s3
  %s6 = scalar_select 0, %s5, %s3
  loop: start=0, step=1, limit=4
  $region2: #{dice_bce_loss.1} parent=0 // loop_pre_header
    _
  $region3: #{dice_bce_loss.1} parent=0 // loop_header
    %s8 = sphi 0, %s12
    %p9 = scmp.ge.s32.totalorder %s8, 4
    %s15 = sphi 0, %s27
    %s16 = sphi 0, %s23
    %s17 = sphi 0, %s15
    %s18 = sphi 0, %s16
    %s19 = sphi 0, %s17
    %s20 = sphi 0, %s18
    %s36 = sphi 0, %s38
    %s39 = sphi 0, %s36
    %s40 = sphi 0, %s39
    %s56 = sphi 0, %s40
    %s68 = sphi 0, %s70
    %s71 = sphi 0, %s68
    %s72 = sphi 0, %s71
    %s88 = sphi 0, %s72
    %s94 = sphi 0, %s96
    %s97 = sphi 0, %s94
    %s98 = sphi 0, %s97
    %s114 = sphi 0, %s98
  $region4: #{dice_bce_loss.1} parent=0 // loop_header_branch
    %11 = sbr.rel (%p9) target = $region8
  $region5: #{dice_bce_loss.1} parent=0 // loop_body
    %s13 = ssub.s32 %s8, 1
    %s14 = ssub.s32 %s8, 2
    %s21 = sadd.s32 1, %s16
    %p22 = scmp.ge.s32.totalorder %s21, 1
    %s23 = scalar_select %p22, 0, %s21
    %s24 = sadd.s32 1, %s15
    %s25 = scalar_select %p22, %s24, %s15
    %p26 = scmp.ge.s32.totalorder %s25, 2
    %s27 = scalar_select %p26, 0, %s25
    %s28 = sadd.s32 %s15, %s16
    %p29 = scmp.lt.s32.totalorder %s28, 1
    %s30 = scalar_select %p29, %s28, 1
    %s31 = sadd.s32 %s27, %s23
    %p32 = scmp.lt.s32.totalorder %s31, 1
    %s33 = scalar_select %p32, %s31, 1
    %s34 = ssub.s32 %s30, %s33
    %p35 = scmp.eq.s32.totalorder %s34, 0
    %s37 = sadd.s32 %s36, 1
    %s38 = scalar_select %p35, %s36, %s37
    %p41 = pneg %p35
    %p42 = scmp.eq.s32.totalorder %s8, 1
    %p43 = por %p41, %p42
    %p44 = scmp.ne.s32.totalorder %s36, %s39
    %p45 = scmp.eq.s32.totalorder %s8, 0
    %p46 = por %p44, %p45
    %p47 = scmp.ne.s32.totalorder %s36, %s39
    %p48 = scmp.eq.s32.totalorder %s13, 1
    %p49 = por %p47, %p48
    %p50 = scmp.ne.s32.totalorder %s39, %s40
    %p51 = scmp.eq.s32.totalorder %s13, 0
    %p52 = por %p50, %p51
    %p53 = scmp.ne.s32.totalorder %s39, %s40
    %p54 = scmp.eq.s32.totalorder %s14, 1
    %p55 = por %p53, %p54
    %p57 = scmp.ne.s32.totalorder %s40, %s56
    %p58 = scmp.eq.s32.totalorder %s14, 0
    %p59 = por %p57, %p58
    %s60 = sadd.s32 %s15, %s16
    %p61 = scmp.lt.s32.totalorder %s60, 1
    %s62 = scalar_select %p61, %s60, 1
    %s63 = sadd.s32 %s27, %s23
    %p64 = scmp.lt.s32.totalorder %s63, 1
    %s65 = scalar_select %p64, %s63, 1
    %s66 = ssub.s32 %s62, %s65
    %p67 = scmp.eq.s32.totalorder %s66, 0
    %s69 = sadd.s32 %s68, 1
    %s70 = scalar_select %p67, %s68, %s69
    %p73 = pneg %p67
    %p74 = scmp.eq.s32.totalorder %s8, 1
    %p75 = por %p73, %p74
    %p76 = scmp.ne.s32.totalorder %s68, %s71
    %p77 = scmp.eq.s32.totalorder %s8, 0
    %p78 = por %p76, %p77
    %p79 = scmp.ne.s32.totalorder %s68, %s71
    %p80 = scmp.eq.s32.totalorder %s13, 1
    %p81 = por %p79, %p80
    %p82 = scmp.ne.s32.totalorder %s71, %s72
    %p83 = scmp.eq.s32.totalorder %s13, 0
    %p84 = por %p82, %p83
    %p85 = scmp.ne.s32.totalorder %s71, %s72
    %p86 = scmp.eq.s32.totalorder %s14, 1
    %p87 = por %p85, %p86
    %p89 = scmp.ne.s32.totalorder %s72, %s88
    %p90 = scmp.eq.s32.totalorder %s14, 0
    %p91 = por %p89, %p90
    %s92 = ssub.s32 %s15, %s27
    %p93 = scmp.eq.s32.totalorder %s92, 0
    %s95 = sadd.s32 %s94, 1
    %s96 = scalar_select %p93, %s94, %s95
    %p99 = pneg %p93
    %p100 = scmp.eq.s32.totalorder %s8, 1
    %p101 = por %p99, %p100
    %p102 = scmp.ne.s32.totalorder %s94, %s97
    %p103 = scmp.eq.s32.totalorder %s8, 0
    %p104 = por %p102, %p103
    %p105 = scmp.ne.s32.totalorder %s94, %s97
    %p106 = scmp.eq.s32.totalorder %s13, 1
    %p107 = por %p105, %p106
    %p108 = scmp.ne.s32.totalorder %s97, %s98
    %p109 = scmp.eq.s32.totalorder %s13, 0
    %p110 = por %p108, %p109
    %p111 = scmp.ne.s32.totalorder %s97, %s98
    %p112 = scmp.eq.s32.totalorder %s14, 1
    %p113 = por %p111, %p112
    %p115 = scmp.ne.s32.totalorder %s98, %s114
    %p116 = scmp.eq.s32.totalorder %s14, 0
    %p117 = por %p115, %p116
    %p118 = scmp.le.s32.totalorder 1, %s8
    %p119 = scmp.lt.s32.totalorder %s8, 3
    %p120 = pnand %p118, %p119
    %p121 = pneg %p120
    // Predicated region
    $region9: #{dice_bce_loss.1} parent=5 // pred_check
      _
    $region10: #{dice_bce_loss.1} parent=5 // pred_check_branch
      %123 = sbr.rel (%p120) target = $region12
    $region11: #{dice_bce_loss.1} parent=5 // pred_region
      %s124 = ssub.s32 %s8, 1
    $region12: #{dice_bce_loss.1} parent=5 // pred_fallthru
      _
    %p125 = scmp.lt.s32.totalorder %s8, 2
    // Predicated region
    $region13: #{dice_bce_loss.1} parent=5 // pred_check
      %p126 = pneg %p125
    $region14: #{dice_bce_loss.1} parent=5 // pred_check_branch
      %128 = sbr.rel (%p126) target = $region16
    $region15: #{dice_bce_loss.1} parent=5 // pred_region
      // Predicated region
      $region17: #{dice_bce_loss.1} parent=15 // pred_check
        %p129 = pneg %p46
      $region18: #{dice_bce_loss.1} parent=15 // pred_check_branch
        %131 = sbr.rel (%p129) target = $region20
      $region19: #{dice_bce_loss.1} parent=15 // pred_region
        %s132 = sadd.s32 %s15, %s16
        %p133 = scmp.lt.s32.totalorder %s132, 1
        %s134 = scalar_select %p133, %s132, 1
        %p135 = scmp.lt.s32.totalorder %s134, 1
        %s136 = scalar_select %p135, %s134, 1
        %s137 = smul.addr %s136, 8
        %s138 = scalar_lea.vmem %s0, %s137
        %s139 = sadd.s32 %s15, %s16
        %p140 = scmp.lt.s32.totalorder %s139, 1
        %s141 = scalar_select %p140, %s139, 1
      $region20: #{dice_bce_loss.1} parent=15 // pred_fallthru
        _
      // Predicated region
      $region21: #{dice_bce_loss.1} parent=15 // pred_check
        %p142 = pneg %p78
      $region22: #{dice_bce_loss.1} parent=15 // pred_check_branch
        %144 = sbr.rel (%p142) target = $region24
      $region23: #{dice_bce_loss.1} parent=15 // pred_region
        %s145 = sadd.s32 %s15, %s16
        %p146 = scmp.lt.s32.totalorder %s145, 1
        %s147 = scalar_select %p146, %s145, 1
        %p148 = scmp.lt.s32.totalorder %s147, 1
        %s149 = scalar_select %p148, %s147, 1
        %s150 = smul.addr %s149, 8
        %s151 = scalar_lea.vmem %s1, %s150
        %s152 = sadd.s32 %s15, %s16
        %p153 = scmp.lt.s32.totalorder %s152, 1
        %s154 = scalar_select %p153, %s152, 1
      $region24: #{dice_bce_loss.1} parent=15 // pred_fallthru
        _
    $region16: #{dice_bce_loss.1} parent=5 // pred_fallthru
      _
    %p155 = scmp.le.s32.totalorder 1, %s8
    %p156 = scmp.lt.s32.totalorder %s8, 3
    %p157 = pnand %p155, %p156
    %p158 = pneg %p157
    // Predicated region
    $region25: #{dice_bce_loss.1} parent=5 // pred_check
      _
    $region26: #{dice_bce_loss.1} parent=5 // pred_check_branch
      %160 = sbr.rel (%p157) target = $region28
    $region27: #{dice_bce_loss.1} parent=5 // pred_region
      %s161 = ssub.s32 %s8, 1
      %s162 = sadd.s32 %s17, %s18
      %p163 = scmp.lt.s32.totalorder %s162, 1
      %s164 = scalar_select %p163, %s162, 1
      %p165 = scmp.lt.s32.totalorder %s164, 1
      %s166 = scalar_select %p165, %s164, 1
      %s167 = smul.addr %s166, 8
      %s168 = scalar_lea.vmem %s0, %s167
      %p169 = pneg %p52
      %p170 = pneg %p49
      %s171 = sadd.s32 %s17, %s18
      %p172 = scmp.lt.s32.totalorder %s171, 1
      %s173 = scalar_select %p172, %s171, 1
      %p174 = scmp.lt.s32.totalorder %s173, 1
      %s175 = scalar_select %p174, %s173, 1
      %s176 = smul.addr %s175, 8
      %s177 = scalar_lea.vmem %s1, %s176
      %p178 = pneg %p84
      %p179 = pneg %p81
      %p180 = pneg %p110
      %p181 = pneg %p107
      %p182 = scmp.lt.s32.totalorder %s17, 1
      %s183 = scalar_select %p182, %s17, 1
      %s184 = smul.addr %s183, 4
      %s185 = smul.addr %s184, 8
      %s186 = scalar_lea.vmem %s2, %s185
      %s187 = sadd.s32 %s17, %s18
      %p188 = scmp.lt.s32.totalorder %s187, 1
      %s189 = scalar_select %p188, %s187, 1
      %p190 = scmp.lt.s32.totalorder %s189, 1
      %s191 = scalar_select %p190, %s189, 1
      %s192 = smul.addr %s191, 8
      %s193 = scalar_lea.vmem %s0, %s192
      %s194 = sadd.s32 %s17, %s18
      %p195 = scmp.lt.s32.totalorder %s194, 1
      %s196 = scalar_select %p195, %s194, 1
      %s197 = sadd.s32 %s17, %s18
      %p198 = scmp.lt.s32.totalorder %s197, 1
      %s199 = scalar_select %p198, %s197, 1
      %p200 = scmp.lt.s32.totalorder %s199, 1
      %s201 = scalar_select %p200, %s199, 1
      %s202 = smul.addr %s201, 8
      %s203 = scalar_lea.vmem %s1, %s202
      %s204 = sadd.s32 %s17, %s18
      %p205 = scmp.lt.s32.totalorder %s204, 1
      %s206 = scalar_select %p205, %s204, 1
      %p207 = scmp.lt.s32.totalorder %s17, 1
      %s208 = scalar_select %p207, %s17, 1
      %s209 = smul.addr %s208, 4
      %s210 = smul.addr %s209, 8
      %s211 = scalar_lea.vmem %s2, %s210
      %p212 = scmp.eq.s32.totalorder %s18, 0
      // Predicated region
      $region29: #{dice_bce_loss.1} parent=27 // pred_check
        %p213 = pneg %p212
      $region30: #{dice_bce_loss.1} parent=27 // pred_check_branch
        %215 = sbr.rel (%p213) target = $region32
      $region31: #{dice_bce_loss.1} parent=27 // pred_region
        %216 = vst [vmem:[%s211] sm:$0xff] 0.0
        %217 = vst [vmem:[%s211 + $0x8] sm:$0xff] 0.0
        %218 = vst [vmem:[%s211 + $0x10] sm:$0xff] 0.0
        %219 = vst [vmem:[%s211 + $0x18] sm:$0xff] 0.0
      $region32: #{dice_bce_loss.1} parent=27 // pred_fallthru
        _
      %s220 = sadd.s32 %s17, %s18
      %s221 = smul.u32 %s220, 8
      %s222 = sadd.s32 %s221, 8
      %p223 = scmp.le.s32.totalorder %s222, 16
      // Predicated region
      $region33: #{dice_bce_loss.1} parent=27 // pred_check
        %p224 = pneg %p223
      $region34: #{dice_bce_loss.1} parent=27 // pred_check_branch
        %226 = sbr.rel (%p224) target = $region36
      $region35: #{dice_bce_loss.1} parent=27 // pred_region
        %v227 = vld [vmem:[%s193] sm:$0xff]
        %v228 = vld [vmem:[%s203] sm:$0xff]
        %v229 = vlog2.pop %v227
        %v230 = vmul.f32 %v229, 0.6931472
        %v231 = vmax.f32 %v230, -100.0
        %v232 = vsub.f32 1.0, %v227
        %v233 = vlog2.pop %v232
        %v234 = vmul.f32 %v233, 0.6931472
        %v235 = vmax.f32 %v234, -100.0
        %v236 = vsub.f32 %v231, %v235
        %v237 = vmul.f32 %v228, %v236
        %v238 = vadd.f32 %v237, %v235
        %v239 = vmul.f32 %v227, %v228
        %v240 = vadd.f32 %v239, 0.0
        %v241 = vadd.f32 %v227, 0.0
        %v242 = vadd.f32 %v228, 0.0
        %v243 = vadd.f32 %v238, 0.0
        %v244 = vld [vmem:[%s211] sm:$0xff]
        %v245 = vadd.f32 %v244, %v240
        %246 = vst [vmem:[%s211] sm:$0xff] %v245
        %s247 = scalar_lea.vmem %s211, 8
        %v248 = vld [vmem:[%s247] sm:$0xff]
        %v249 = vadd.f32 %v248, %v241
        %250 = vst [vmem:[%s247] sm:$0xff] %v249
        %s251 = scalar_lea.vmem %s211, 16
        %v252 = vld [vmem:[%s251] sm:$0xff]
        %v253 = vadd.f32 %v252, %v242
        %254 = vst [vmem:[%s251] sm:$0xff] %v253
        %s255 = scalar_lea.vmem %s211, 24
        %v256 = vld [vmem:[%s255] sm:$0xff]
        %v257 = vadd.f32 %v256, %v243
        %258 = vst [vmem:[%s255] sm:$0xff] %v257
      $region36: #{dice_bce_loss.1} parent=27 // pred_fallthru
        _
      %p259 = scmp.gt.s32.totalorder %s222, 16
      // Predicated region
      $region37: #{dice_bce_loss.1} parent=27 // pred_check
        %p260 = pneg %p259
      $region38: #{dice_bce_loss.1} parent=27 // pred_check_branch
        %262 = sbr.rel (%p260) target = $region40
      $region39: #{dice_bce_loss.1} parent=27 // pred_region
        %v263 = vld [vmem:[%s193] sm:$0xff]
        %v264 = vld [vmem:[%s203] sm:$0xff]
        %v265 = vlaneseq
        %v266 = vshrl.u32 %v265, 7
        %s267 = sadd.s32 %s221, 0
        %v268 = vstv %s267
        %v269 = vadd.s32 %v268, %v266
        %vm270 = vcmp.lt.s32.totalorder %v269, 16
        %v271 = vsel %vm270, %v263, 0.0
        %v272 = vsel %vm270, %v264, 0.0
        %v273 = vlog2.pop %v271
        %v274 = vmul.f32 %v273, 0.6931472
        %v275 = vmax.f32 %v274, -100.0
        %v276 = vsub.f32 1.0, %v271
        %v277 = vlog2.pop %v276
        %v278 = vmul.f32 %v277, 0.6931472
        %v279 = vmax.f32 %v278, -100.0
        %v280 = vsub.f32 %v275, %v279
        %v281 = vmul.f32 %v272, %v280
        %v282 = vadd.f32 %v281, %v279
        %v283 = vmul.f32 %v271, %v272
        %v284 = vadd.f32 %v283, 0.0
        %v285 = vadd.f32 %v271, 0.0
        %v286 = vadd.f32 %v272, 0.0
        %v287 = vadd.f32 %v282, 0.0
        %v288 = vld [vmem:[%s211] sm:$0xff]
        %v289 = vadd.f32 %v288, %v284
        %290 = vst [vmem:[%s211] sm:$0xff] %v289
        %s291 = scalar_lea.vmem %s211, 8
        %v292 = vld [vmem:[%s291] sm:$0xff]
        %v293 = vadd.f32 %v292, %v285
        %294 = vst [vmem:[%s291] sm:$0xff] %v293
        %s295 = scalar_lea.vmem %s211, 16
        %v296 = vld [vmem:[%s295] sm:$0xff]
        %v297 = vadd.f32 %v296, %v286
        %298 = vst [vmem:[%s295] sm:$0xff] %v297
        %s299 = scalar_lea.vmem %s211, 24
        %v300 = vld [vmem:[%s299] sm:$0xff]
        %v301 = vadd.f32 %v300, %v287
        %302 = vst [vmem:[%s299] sm:$0xff] %v301
      $region40: #{dice_bce_loss.1} parent=27 // pred_fallthru
        _
      %p303 = scmp.lt.s32.totalorder %s17, 1
      %s304 = scalar_select %p303, %s17, 1
      %s305 = smul.addr %s304, 4
      %s306 = smul.addr %s305, 8
      %s307 = scalar_lea.vmem %s2, %s306
      // Predicated region
      $region41: #{dice_bce_loss.1} parent=27 // pred_check
        %p308 = pneg %p107
      $region42: #{dice_bce_loss.1} parent=27 // pred_check_branch
        %310 = sbr.rel (%p308) target = $region44
      $region43: #{dice_bce_loss.1} parent=27 // pred_region
        _
      $region44: #{dice_bce_loss.1} parent=27 // pred_fallthru
        _
    $region28: #{dice_bce_loss.1} parent=5 // pred_fallthru
      _
    %p311 = scmp.le.s32.totalorder 2, %s8
    // Predicated region
    $region45: #{dice_bce_loss.1} parent=5 // pred_check
      %p312 = pneg %p311
    $region46: #{dice_bce_loss.1} parent=5 // pred_check_branch
      %314 = sbr.rel (%p312) target = $region48
    $region47: #{dice_bce_loss.1} parent=5 // pred_region
      %s315 = ssub.s32 %s8, 2
      // Predicated region
      $region49: #{dice_bce_loss.1} parent=47 // pred_check
        %p316 = pneg %p113
      $region50: #{dice_bce_loss.1} parent=47 // pred_check_branch
        %318 = sbr.rel (%p316) target = $region52
      $region51: #{dice_bce_loss.1} parent=47 // pred_region
        %p319 = scmp.lt.s32.totalorder %s19, 1
        %s320 = scalar_select %p319, %s19, 1
        %s321 = smul.addr %s320, 4
        %s322 = smul.addr %s321, 8
        %s323 = scalar_lea.vmem %s2, %s322
      $region52: #{dice_bce_loss.1} parent=47 // pred_fallthru
        _
    $region48: #{dice_bce_loss.1} parent=5 // pred_fallthru
      _
  $region6: #{dice_bce_loss.1} parent=0 // loop_footer
    %s12 = sadd.s32 1, %s8
  $region7: #{dice_bce_loss.1} parent=0 // loop_footer_branch
    %7 = sbr.rel target = $region3
  $region8: #{dice_bce_loss.1} parent=0 // loop_exit
    _

</llo_original>
